<compile_context>
chip_gen: v6e
topology: v6e:2x2x1
jax: 0.10.0
libtpu: 0.0.40
codegen_flags: <defaults>
</compile_context>

<pallas_src>
import math
from functools import partial

import jax
import jax.numpy as jnp
from jax.experimental import pallas as pl
from jax.experimental.pallas import tpu as pltpu


def _linear_qkv_attn_kernel(q_ref, k_ref, v_ref, o_ref, *, l2_norm_v: bool):
    # Block refs are (Bt, L, C).
    q = q_ref[...]
    k = k_ref[...]
    v = v_ref[...]
    in_dtype = q.dtype                    # MXU operand dtype (bf16 stays bf16)

    ch = q.shape[-1]
    scale = 1.0 / math.sqrt(ch)

    # --- softmax statistics in f32 (only the stats need f32) ---
    qf = q.astype(jnp.float32)
    kf = k.astype(jnp.float32)

    # q softmax over channels (dim -1); fold the 1/sqrt(C) scale into the
    # small per-row reciprocal instead of an extra full-size VPU multiply.
    qe = jnp.exp(qf - jnp.max(qf, axis=-1, keepdims=True))
    q_inv = pl.reciprocal(jnp.sum(qe, axis=-1, keepdims=True), approx=True)  # EUP
    qs = qe * (q_inv * scale)

    # k softmax over the sequence (dim -2).
    ke = jnp.exp(kf - jnp.max(kf, axis=-2, keepdims=True))
    k_inv = pl.reciprocal(jnp.sum(ke, axis=-2, keepdims=True), approx=True)  # EUP
    ks = ke * k_inv

    if l2_norm_v:
        # torch.nn.functional.normalize(v, dim=-1): v / max(||v||_2, 1e-12)
        vf = v.astype(jnp.float32)
        inv_norm = jax.lax.rsqrt(
            jnp.maximum(jnp.sum(vf * vf, axis=-1, keepdims=True), 1e-24))
        v = (vf * inv_norm).astype(in_dtype)

    # --- MXU contractions: batched, no explicit transpose, f32 accumulation ---
    ks_m = ks.astype(in_dtype)
    qs_m = qs.astype(in_dtype)

    # context[b, d, e] = sum_l ks[b, l, d] * v[b, l, e]       -> (Bt, C, C)
    context = jnp.einsum('bld,ble->bde', ks_m, v,
                         preferred_element_type=jnp.float32)
    # res[b, l, e] = sum_d qs[b, l, d] * context[b, d, e]     -> (Bt, L, C)
    res = jnp.einsum('bld,bde->ble', qs_m, context.astype(in_dtype),
                     preferred_element_type=jnp.float32)

    o_ref[...] = res.astype(o_ref.dtype)


def _vmem_limit_bytes():
    """Generation-aware scoped-VMEM limit (v5e/v6e: 128 MiB phys, v7x: 64 MiB)."""
    try:
        cap = int(pltpu.get_tpu_info().vmem_capacity_bytes)
    except Exception:
        cap = 64 << 20  # conservative fallback (matches v7x physical VMEM)
    # 75% of physical, capped at 100 MiB: ~96 MiB on v5e/v6e, ~48 MiB on v7x.
    return int(min(cap * 3 // 4, 100 << 20))


def _pick_batch_tile(B, L, C, itemsize, vmem_limit_bytes,
                     target_block_bytes=1 << 20):
    """Largest batch tile that keeps blocks ~1 MiB and double-buffers in VMEM."""
    per = L * C * itemsize                      # bytes of one (1, L, C) slab
    # 4 arrays (q, k, v, out) x 2 pipeline buffers; keep ~50% headroom.
    cap = max(1, (vmem_limit_bytes // 2) // (8 * per))
    want = max(1, target_block_bytes // per)
    bt = max(1, min(B, cap, want))
    # Keep at least 2 grid steps when possible (v7x has 2 TCs; also enables
    # double-buffered pipelining).
    while bt > 1 and B // bt < 2:
        bt -= 1
    # Avoid ragged trailing blocks: round down to a divisor of B.
    while B % bt != 0:
        bt -= 1
    return bt


def linear_qkv_attention(q, k, v, *, l2_norm_v: bool = False, batch_tile=None):
    """Linear QKV attention. q, k, v: (n, ..., l, c); returns same shape/dtype."""
    assert q.shape == k.shape == v.shape
    assert q.dtype == k.dtype == v.dtype
    orig_shape = q.shape
    L, C = orig_shape[-2], orig_shape[-1]
    B = 1
    for d in orig_shape[:-2]:
        B *= d
    B = max(B, 1)

    qf = q.reshape(B, L, C)
    kf = k.reshape(B, L, C)
    vf = v.reshape(B, L, C)

    vmem_limit = _vmem_limit_bytes()
    if batch_tile is None:
        batch_tile = _pick_batch_tile(B, L, C, jnp.dtype(q.dtype).itemsize,
                                      vmem_limit)
    Bt = int(batch_tile)
    assert B % Bt == 0

    kernel = partial(_linear_qkv_attn_kernel, l2_norm_v=l2_norm_v)
    # Last two block dims equal the full array dims -> (8,128) constraint OK.
    block = pl.BlockSpec((Bt, L, C), lambda b: (b, 0, 0))

    out = pl.pallas_call(
        kernel,
        out_shape=jax.ShapeDtypeStruct((B, L, C), q.dtype),
        grid_spec=pltpu.PrefetchScalarGridSpec(
            num_scalar_prefetch=0,
            grid=(B // Bt,),
            in_specs=[block, block, block],
            out_specs=block,
        ),
        compiler_params=pltpu.CompilerParams(
            dimension_semantics=("parallel",),
            vmem_limit_bytes=vmem_limit,
        ),
    )(qf, kf, vf)

    return out.reshape(orig_shape)


def _reference(q, k, v, l2_norm_v=False):
    q = q.astype(jnp.float32)
    k = k.astype(jnp.float32)
    v = v.astype(jnp.float32)
    ch = q.shape[-1]
    scale = 1.0 / math.sqrt(ch)
    qs = jax.nn.softmax(q, axis=-1) * scale
    ks = jax.nn.softmax(k, axis=-2)
    if l2_norm_v:
        v = v / jnp.maximum(
            jnp.sqrt(jnp.sum(v * v, axis=-1, keepdims=True)), 1e-12)
    context = jnp.einsum('...nd,...ne->...de', ks, v)
    return jnp.einsum('...nd,...de->...ne', qs, context)


if __name__ == "__main__":
    key = jax.random.PRNGKey(0)
    kq, kk, kv = jax.random.split(key, 3)
    # (n=2, heads=4, l=16, c=32) — (n, ..., l, c)
    shape = (2, 4, 16, 32)
    q = jax.random.normal(kq, shape, dtype=jnp.float32)
    k = jax.random.normal(kk, shape, dtype=jnp.float32)
    v = jax.random.normal(kv, shape, dtype=jnp.float32)

    # f32 path, both l2_norm_v settings (approx reciprocal => ~1e-4 rel error).
    for l2 in (False, True):
        out = jax.block_until_ready(linear_qkv_attention(q, k, v, l2_norm_v=l2))
        ref = _reference(q, k, v, l2_norm_v=l2)
        assert out.shape == shape
        err = float(jnp.max(jnp.abs(out.astype(jnp.float32) - ref)))
        assert jnp.allclose(out.astype(jnp.float32), ref,
                            atol=2e-3, rtol=2e-3), (l2, err)

    # bf16 path: operands stay bf16 on the MXU, f32 accumulation.
    qb, kb, vb = (x.astype(jnp.bfloat16) for x in (q, k, v))
    outb = jax.block_until_ready(linear_qkv_attention(qb, kb, vb))
    refb = _reference(qb, kb, vb)
    errb = float(jnp.max(jnp.abs(outb.astype(jnp.float32) - refb)))
    assert outb.dtype == jnp.bfloat16 and outb.shape == shape
    assert jnp.allclose(outb.astype(jnp.float32), refb,
                        atol=2e-2, rtol=2e-2), errb

    print("KERNEL_OK")
</pallas_src>

<mosaic_0001>
module attributes {stable_mosaic.version = 11 : i64} {
  func.func @_linear_qkv_attn_kernel(%arg0: i32, %arg1: memref<4x16x32xf32, #tpu.memory_space<vmem>>, %arg2: memref<4x16x32xf32, #tpu.memory_space<vmem>>, %arg3: memref<4x16x32xf32, #tpu.memory_space<vmem>>, %arg4: memref<4x16x32xf32, #tpu.memory_space<vmem>>) attributes {dimension_semantics = [#tpu.dimension_semantics<parallel>], iteration_bounds = array<i64: 2>, scalar_prefetch = 0 : i64, scratch_operands = 0 : i64, tpu.core_type = #tpu.core_type<tc>, window_params = [{transform_indices = @transform_0, window_bounds = array<i64: 4, 16, 32>}, {transform_indices = @transform_1, window_bounds = array<i64: 4, 16, 32>}, {transform_indices = @transform_2, window_bounds = array<i64: 4, 16, 32>}, {transform_indices = @transform_3, window_bounds = array<i64: 4, 16, 32>}]} {
    %c0 = arith.constant 0 : index
    %c0_0 = arith.constant 0 : index
    %c0_1 = arith.constant 0 : index
    %0 = vector.load %arg1[%c0, %c0_0, %c0_1] : memref<4x16x32xf32, #tpu.memory_space<vmem>>, vector<4x16x32xf32>
    %c0_2 = arith.constant 0 : index
    %c0_3 = arith.constant 0 : index
    %c0_4 = arith.constant 0 : index
    %1 = vector.load %arg2[%c0_2, %c0_3, %c0_4] : memref<4x16x32xf32, #tpu.memory_space<vmem>>, vector<4x16x32xf32>
    %c0_5 = arith.constant 0 : index
    %c0_6 = arith.constant 0 : index
    %c0_7 = arith.constant 0 : index
    %2 = vector.load %arg3[%c0_5, %c0_6, %c0_7] : memref<4x16x32xf32, #tpu.memory_space<vmem>>, vector<4x16x32xf32>
    %cst = arith.constant dense<0xFF800000> : vector<4x16xf32>
    %3 = vector.multi_reduction <maximumf>, %0, %cst [2] : vector<4x16x32xf32> to vector<4x16xf32>
    %4 = vector.shape_cast %3 : vector<4x16xf32> to vector<4x16x1xf32>
    %5 = vector.broadcast %4 : vector<4x16x1xf32> to vector<4x16x32xf32>
    %6 = arith.subf %0, %5 : vector<4x16x32xf32>
    %7 = math.exp %6 : vector<4x16x32xf32>
    %cst_8 = arith.constant dense<0.000000e+00> : vector<4x16xf32>
    %8 = vector.multi_reduction <add>, %7, %cst_8 [2] : vector<4x16x32xf32> to vector<4x16xf32>
    %9 = vector.shape_cast %8 : vector<4x16xf32> to vector<4x16x1xf32>
    %10 = tpu.reciprocal %9 {approx = true} : vector<4x16x1xf32> -> vector<4x16x1xf32>
    %cst_9 = arith.constant 0.176776692 : f32
    %11 = vector.broadcast %cst_9 : f32 to vector<4x16x1xf32>
    %12 = arith.mulf %10, %11 : vector<4x16x1xf32>
    %13 = vector.broadcast %12 : vector<4x16x1xf32> to vector<4x16x32xf32>
    %14 = arith.mulf %7, %13 : vector<4x16x32xf32>
    %cst_10 = arith.constant dense<0xFF800000> : vector<4x32xf32>
    %15 = vector.multi_reduction <maximumf>, %1, %cst_10 [1] : vector<4x16x32xf32> to vector<4x32xf32>
    %16 = vector.shape_cast %15 : vector<4x32xf32> to vector<4x1x32xf32>
    %17 = vector.broadcast %16 : vector<4x1x32xf32> to vector<4x16x32xf32>
    %18 = arith.subf %1, %17 : vector<4x16x32xf32>
    %19 = math.exp %18 : vector<4x16x32xf32>
    %cst_11 = arith.constant dense<0.000000e+00> : vector<4x32xf32>
    %20 = vector.multi_reduction <add>, %19, %cst_11 [1] : vector<4x16x32xf32> to vector<4x32xf32>
    %21 = vector.shape_cast %20 : vector<4x32xf32> to vector<4x1x32xf32>
    %22 = tpu.reciprocal %21 {approx = true} : vector<4x1x32xf32> -> vector<4x1x32xf32>
    %23 = vector.broadcast %22 : vector<4x1x32xf32> to vector<4x16x32xf32>
    %24 = arith.mulf %19, %23 : vector<4x16x32xf32>
    "tpu.trace_start"() <{level = 10 : i32, message = "bld,ble->bde"}> : () -> ()
    %cst_12 = arith.constant dense<0.000000e+00> : vector<4x32x32xf32>
    %25 = tpu.matmul %24, %2, %cst_12 {dimension_numbers = #tpu.dot_dimension_numbers<[1], [1], [2], [2], [0, 0, 0, 2, 1, 2], [0], [0]>} : vector<4x16x32xf32>, vector<4x16x32xf32>, vector<4x32x32xf32> -> vector<4x32x32xf32>
    "tpu.trace_stop"() : () -> ()
    "tpu.trace_start"() <{level = 10 : i32, message = "bld,bde->ble"}> : () -> ()
    %cst_13 = arith.constant dense<0.000000e+00> : vector<4x16x32xf32>
    %26 = tpu.matmul %14, %25, %cst_13 {dimension_numbers = #tpu.dot_dimension_numbers<[2], [1], [1], [2], [0, 0, 0, 1, 1, 2], [0], [0]>} : vector<4x16x32xf32>, vector<4x32x32xf32>, vector<4x16x32xf32> -> vector<4x16x32xf32>
    "tpu.trace_stop"() : () -> ()
    %c0_14 = arith.constant 0 : index
    %c0_15 = arith.constant 0 : index
    %c0_16 = arith.constant 0 : index
    %27 = vector.load %arg4[%c0_14, %c0_15, %c0_16] : memref<4x16x32xf32, #tpu.memory_space<vmem>>, vector<4x16x32xf32>
    tpu.vector_store %arg4[%c0_14, %c0_15, %c0_16], %26 {strides = array<i32>} : memref<4x16x32xf32, #tpu.memory_space<vmem>>, vector<4x16x32xf32>,
    return
  }
  func.func @transform_0(%arg0: i32) -> (i32, i32, i32) {
    %c0_i32 = arith.constant 0 : i32
    %c0_i32_0 = arith.constant 0 : i32
    %c0_i32_1 = arith.constant 0 : i32
    return %arg0, %c0_i32, %c0_i32_0 : i32, i32, i32
  }
  func.func @transform_1(%arg0: i32) -> (i32, i32, i32) {
    %c0_i32 = arith.constant 0 : i32
    %c0_i32_0 = arith.constant 0 : i32
    %c0_i32_1 = arith.constant 0 : i32
    return %arg0, %c0_i32, %c0_i32_0 : i32, i32, i32
  }
  func.func @transform_2(%arg0: i32) -> (i32, i32, i32) {
    %c0_i32 = arith.constant 0 : i32
    %c0_i32_0 = arith.constant 0 : i32
    %c0_i32_1 = arith.constant 0 : i32
    return %arg0, %c0_i32, %c0_i32_0 : i32, i32, i32
  }
  func.func @transform_3(%arg0: i32) -> (i32, i32, i32) {
    %c0_i32 = arith.constant 0 : i32
    %c0_i32_0 = arith.constant 0 : i32
    %c0_i32_1 = arith.constant 0 : i32
    return %arg0, %c0_i32, %c0_i32_0 : i32, i32, i32
  }
}

</mosaic_0001>

<llo_original>
// kernel: tpu_custom_call.1
$region0: #{tpu_custom_call.1}
  #allocation0 [shape = 'u32[]', space=smem, size = 0x4, offset = 0x4, fixed_abs, tag = 'smem constant byte address 0x4 - core index']
  #allocation1 [shape = 'u32[144,128]{1,0:T(1,128)}', space=vmem, size = 0x12000, scoped, tag = 'internal scratch']
  %s0 = inlined_call_operand.hbm [shape: f32[8,16,32], index: 0, kind: input, shape index: {}]
  %s1 = inlined_call_operand.hbm [shape: f32[8,16,32], index: 1, kind: input, shape index: {}]
  %s2 = inlined_call_operand.hbm [shape: f32[8,16,32], index: 2, kind: input, shape index: {}]
  %s3 = inlined_call_operand.hbm [shape: f32[8,16,32], index: 3, kind: output, shape index: {}]
  %s4 = sld [smem:[#allocation0]]
  $region57: #{tpu_custom_call.1} parent=0
    _
  %s6 = ssub.s32 1, %s4
  %s7 = scalar_select 0, %s6, %s4
  $region1: #{tpu_custom_call.1} parent=0
    #allocation2 [shape = 'u8[65536]{0}', space=vmem, size = 0x10000, scoped, tag = 'input window, operand 0']
    #allocation3 [shape = 's32[2]{0}', space=sflag, size = 0x8, scoped, tag = 'scoped memory for tpu_custom_call.1']
    #allocation4 [shape = 's32[2]{0}', space=sflag, size = 0x8, scoped, tag = 'scoped memory for tpu_custom_call.1']
    #allocation5 [shape = 'u8[65536]{0}', space=vmem, size = 0x10000, scoped, tag = 'input window, operand 1']
    #allocation6 [shape = 's32[2]{0}', space=sflag, size = 0x8, scoped, tag = 'scoped memory for tpu_custom_call.1']
    #allocation7 [shape = 'u8[65536]{0}', space=vmem, size = 0x10000, scoped, tag = 'input window, operand 2']
    #allocation8 [shape = 'u8[65536]{0}', space=vmem, size = 0x10000, scoped, tag = 'output window, operand 0']
    %8 = vsyncpa [#allocation3], 0
    %s9 = scalar_lea.sflag [#allocation3], 1
    %10 = vsyncpa %s9, 0
    %11 = vsyncpa [#allocation6], 0
    %s12 = scalar_lea.sflag [#allocation6], 1
    %13 = vsyncpa %s12, 0
    %14 = vsyncpa [#allocation4], 0
    %s15 = scalar_lea.sflag [#allocation4], 1
    %16 = vsyncpa %s15, 0
    loop: start=0, step=1, limit=4
    $region2: #{tpu_custom_call.1} parent=1 // loop_pre_header
      _
    $region3: #{tpu_custom_call.1} parent=1 // loop_header
      %s18 = sphi 0, %s22
      %p19 = scmp.ge.s32.totalorder %s18, 4
      %s28 = sphi 0, %s30
      %s31 = sphi 0, %s28
      %s32 = sphi 0, %s31
      %s48 = sphi 0, %s32
      %s54 = sphi 0, %s56
      %s57 = sphi 0, %s54
      %s58 = sphi 0, %s57
      %s74 = sphi 0, %s58
      %s80 = sphi 0, %s82
      %s83 = sphi 0, %s80
      %s84 = sphi 0, %s83
      %s100 = sphi 0, %s84
      %s106 = sphi 0, %s108
      %s109 = sphi 0, %s106
      %s110 = sphi 0, %s109
      %s126 = sphi 0, %s110
    $region4: #{tpu_custom_call.1} parent=1 // loop_header_branch
      %21 = sbr.rel (%p19) target = $region8
    $region5: #{tpu_custom_call.1} parent=1 // loop_body
      %s23 = ssub.s32 %s18, 1
      %s24 = ssub.s32 %s18, 2
      %s25 = sadd.s32 %s18, 1
      %s26 = ssub.s32 %s18, %s25
      %p27 = scmp.eq.s32.totalorder %s26, 0
      %s29 = sadd.s32 %s28, 1
      %s30 = scalar_select %p27, %s28, %s29
      %p33 = pneg %p27
      %p34 = scmp.eq.s32.totalorder %s18, 1
      %p35 = por %p33, %p34
      %p36 = scmp.ne.s32.totalorder %s28, %s31
      %p37 = scmp.eq.s32.totalorder %s18, 0
      %p38 = por %p36, %p37
      %p39 = scmp.ne.s32.totalorder %s28, %s31
      %p40 = scmp.eq.s32.totalorder %s23, 1
      %p41 = por %p39, %p40
      %p42 = scmp.ne.s32.totalorder %s31, %s32
      %p43 = scmp.eq.s32.totalorder %s23, 0
      %p44 = por %p42, %p43
      %p45 = scmp.ne.s32.totalorder %s31, %s32
      %p46 = scmp.eq.s32.totalorder %s24, 1
      %p47 = por %p45, %p46
      %p49 = scmp.ne.s32.totalorder %s32, %s48
      %p50 = scmp.eq.s32.totalorder %s24, 0
      %p51 = por %p49, %p50
      %s52 = ssub.s32 %s18, %s25
      %p53 = scmp.eq.s32.totalorder %s52, 0
      %s55 = sadd.s32 %s54, 1
      %s56 = scalar_select %p53, %s54, %s55
      %p59 = pneg %p53
      %p60 = scmp.eq.s32.totalorder %s18, 1
      %p61 = por %p59, %p60
      %p62 = scmp.ne.s32.totalorder %s54, %s57
      %p63 = scmp.eq.s32.totalorder %s18, 0
      %p64 = por %p62, %p63
      %p65 = scmp.ne.s32.totalorder %s54, %s57
      %p66 = scmp.eq.s32.totalorder %s23, 1
      %p67 = por %p65, %p66
      %p68 = scmp.ne.s32.totalorder %s57, %s58
      %p69 = scmp.eq.s32.totalorder %s23, 0
      %p70 = por %p68, %p69
      %p71 = scmp.ne.s32.totalorder %s57, %s58
      %p72 = scmp.eq.s32.totalorder %s24, 1
      %p73 = por %p71, %p72
      %p75 = scmp.ne.s32.totalorder %s58, %s74
      %p76 = scmp.eq.s32.totalorder %s24, 0
      %p77 = por %p75, %p76
      %s78 = ssub.s32 %s18, %s25
      %p79 = scmp.eq.s32.totalorder %s78, 0
      %s81 = sadd.s32 %s80, 1
      %s82 = scalar_select %p79, %s80, %s81
      %p85 = pneg %p79
      %p86 = scmp.eq.s32.totalorder %s18, 1
      %p87 = por %p85, %p86
      %p88 = scmp.ne.s32.totalorder %s80, %s83
      %p89 = scmp.eq.s32.totalorder %s18, 0
      %p90 = por %p88, %p89
      %p91 = scmp.ne.s32.totalorder %s80, %s83
      %p92 = scmp.eq.s32.totalorder %s23, 1
      %p93 = por %p91, %p92
      %p94 = scmp.ne.s32.totalorder %s83, %s84
      %p95 = scmp.eq.s32.totalorder %s23, 0
      %p96 = por %p94, %p95
      %p97 = scmp.ne.s32.totalorder %s83, %s84
      %p98 = scmp.eq.s32.totalorder %s24, 1
      %p99 = por %p97, %p98
      %p101 = scmp.ne.s32.totalorder %s84, %s100
      %p102 = scmp.eq.s32.totalorder %s24, 0
      %p103 = por %p101, %p102
      %s104 = ssub.s32 %s18, %s25
      %p105 = scmp.eq.s32.totalorder %s104, 0
      %s107 = sadd.s32 %s106, 1
      %s108 = scalar_select %p105, %s106, %s107
      %p111 = pneg %p105
      %p112 = scmp.eq.s32.totalorder %s18, 1
      %p113 = por %p111, %p112
      %p114 = scmp.ne.s32.totalorder %s106, %s109
      %p115 = scmp.eq.s32.totalorder %s18, 0
      %p116 = por %p114, %p115
      %p117 = scmp.ne.s32.totalorder %s106, %s109
      %p118 = scmp.eq.s32.totalorder %s23, 1
      %p119 = por %p117, %p118
      %p120 = scmp.ne.s32.totalorder %s109, %s110
      %p121 = scmp.eq.s32.totalorder %s23, 0
      %p122 = por %p120, %p121
      %p123 = scmp.ne.s32.totalorder %s109, %s110
      %p124 = scmp.eq.s32.totalorder %s24, 1
      %p125 = por %p123, %p124
      %p127 = scmp.ne.s32.totalorder %s110, %s126
      %p128 = scmp.eq.s32.totalorder %s24, 0
      %p129 = por %p127, %p128
      %p130 = scmp.le.s32.totalorder 1, %s18
      %p131 = scmp.lt.s32.totalorder %s18, 3
      %p132 = pnand %p130, %p131
      %p133 = pneg %p132
      // Predicated region
      $region9: #{tpu_custom_call.1} parent=5 // pred_check
        _
      $region10: #{tpu_custom_call.1} parent=5 // pred_check_branch
        %135 = sbr.rel (%p132) target = $region12
      $region11: #{tpu_custom_call.1} parent=5 // pred_region
        %s136 = ssub.s32 %s18, 1
      $region12: #{tpu_custom_call.1} parent=5 // pred_fallthru
        _
      %p137 = scmp.lt.s32.totalorder %s18, 2
      // Predicated region
      $region13: #{tpu_custom_call.1} parent=5 // pred_check
        %p138 = pneg %p137
      $region14: #{tpu_custom_call.1} parent=5 // pred_check_branch
        %140 = sbr.rel (%p138) target = $region16
      $region15: #{tpu_custom_call.1} parent=5 // pred_region
        // Predicated region
        $region17: #{tpu_custom_call.1} parent=15 // pred_check
          %p141 = pneg %p38
        $region18: #{tpu_custom_call.1} parent=15 // pred_check_branch
          %143 = sbr.rel (%p141) target = $region20
        $region19: #{tpu_custom_call.1} parent=15 // pred_region
          %s144 = sand.u32 %s28, 1
          %s145 = scalar_lea.sflag [#allocation3], %s144
          %s146 = sand.u32 %s28, 1
          %s147 = smul.addr %s146, 64
          %s148 = scalar_lea.vmem [#allocation2], %s147
          %s149 = smul.u32 4, %s18
          %s151 = ssub.s32 1024, 1024
          %152 = vsyncadd %s145, %s151
          %s153 = smul.addr %s149, 2
          %s154 = smul.addr %s153, 128
          %s155 = scalar_lea.hbm %s0, %s154
          %s156 = sshll.u32 %s148, 4
          %s157 = int_to_ptr.vmem [resolvable:$true] %s156
          %162 = dma.hbm_to_vmem [thread:$0]  %s155, 1024, %s157, %s145, 128, 128, 8
        $region20: #{tpu_custom_call.1} parent=15 // pred_fallthru
          _
        // Predicated region
        $region21: #{tpu_custom_call.1} parent=15 // pred_check
          %p163 = pneg %p64
        $region22: #{tpu_custom_call.1} parent=15 // pred_check_branch
          %165 = sbr.rel (%p163) target = $region24
        $region23: #{tpu_custom_call.1} parent=15 // pred_region
          %s166 = sand.u32 %s18, 1
          %s167 = scalar_lea.sflag [#allocation6], %s166
          %s168 = sand.u32 %s54, 1
          %s169 = smul.addr %s168, 64
          %s170 = scalar_lea.vmem [#allocation5], %s169
          %s171 = smul.u32 4, %s18
          %s173 = ssub.s32 1024, 1024
          %174 = vsyncadd %s167, %s173
          %s175 = smul.addr %s171, 2
          %s176 = smul.addr %s175, 128
          %s177 = scalar_lea.hbm %s1, %s176
          %s178 = sshll.u32 %s170, 4
          %s179 = int_to_ptr.vmem [resolvable:$true] %s178
          %184 = dma.hbm_to_vmem [thread:$0]  %s177, 1024, %s179, %s167, 128, 128, 8
        $region24: #{tpu_custom_call.1} parent=15 // pred_fallthru
          _
        // Predicated region
        $region25: #{tpu_custom_call.1} parent=15 // pred_check
          %p185 = pneg %p90
        $region26: #{tpu_custom_call.1} parent=15 // pred_check_branch
          %187 = sbr.rel (%p185) target = $region28
        $region27: #{tpu_custom_call.1} parent=15 // pred_region
          %s188 = sand.u32 %s18, 1
          %s189 = scalar_lea.sflag [#allocation6], %s188
          %s190 = sand.u32 %s80, 1
          %s191 = smul.addr %s190, 64
          %s192 = scalar_lea.vmem [#allocation7], %s191
          %s193 = smul.u32 4, %s18
          %s195 = ssub.s32 1024, 1024
          %196 = vsyncadd %s189, %s195
          %s197 = smul.addr %s193, 2
          %s198 = smul.addr %s197, 128
          %s199 = scalar_lea.hbm %s2, %s198
          %s200 = sshll.u32 %s192, 4
          %s201 = int_to_ptr.vmem [resolvable:$true] %s200
          %206 = dma.hbm_to_vmem [thread:$0]  %s199, 1024, %s201, %s189, 128, 128, 8
        $region28: #{tpu_custom_call.1} parent=15 // pred_fallthru
          _
      $region16: #{tpu_custom_call.1} parent=5 // pred_fallthru
        _
      %p207 = scmp.le.s32.totalorder 1, %s18
      %p208 = scmp.lt.s32.totalorder %s18, 3
      %p209 = pnand %p207, %p208
      %p210 = pneg %p209
      // Predicated region
      $region29: #{tpu_custom_call.1} parent=5 // pred_check
        _
      $region30: #{tpu_custom_call.1} parent=5 // pred_check_branch
        %212 = sbr.rel (%p209) target = $region32
      $region31: #{tpu_custom_call.1} parent=5 // pred_region
        %s213 = ssub.s32 %s18, 1
        %s214 = sand.u32 %s31, 1
        %s215 = scalar_lea.sflag [#allocation3], %s214
        %s216 = sand.u32 %s31, 1
        %s217 = smul.addr %s216, 64
        %s218 = scalar_lea.vmem [#allocation2], %s217
        // Predicated region
        $region33: #{tpu_custom_call.1} parent=31 // pred_check
          %p219 = pneg %p44
        $region34: #{tpu_custom_call.1} parent=31 // pred_check_branch
          %221 = sbr.rel (%p219) target = $region36
        $region35: #{tpu_custom_call.1} parent=31 // pred_region
          %222 = dma.done %s215, 1024
        $region36: #{tpu_custom_call.1} parent=31 // pred_fallthru
          _
        %s223 = sand.u32 %s23, 1
        %s224 = scalar_lea.sflag [#allocation6], %s223
        %s225 = sand.u32 %s57, 1
        %s226 = smul.addr %s225, 64
        %s227 = scalar_lea.vmem [#allocation5], %s226
        // Predicated region
        $region37: #{tpu_custom_call.1} parent=31 // pred_check
          %p228 = pneg %p70
        $region38: #{tpu_custom_call.1} parent=31 // pred_check_branch
          %230 = sbr.rel (%p228) target = $region40
        $region39: #{tpu_custom_call.1} parent=31 // pred_region
          %231 = dma.done %s224, 1024
        $region40: #{tpu_custom_call.1} parent=31 // pred_fallthru
          _
        %s232 = sand.u32 %s23, 1
        %s233 = scalar_lea.sflag [#allocation6], %s232
        %s234 = sand.u32 %s83, 1
        %s235 = smul.addr %s234, 64
        %s236 = scalar_lea.vmem [#allocation7], %s235
        // Predicated region
        $region41: #{tpu_custom_call.1} parent=31 // pred_check
          %p237 = pneg %p96
        $region42: #{tpu_custom_call.1} parent=31 // pred_check_branch
          %239 = sbr.rel (%p237) target = $region44
        $region43: #{tpu_custom_call.1} parent=31 // pred_region
          %240 = dma.done %s233, 1024
        $region44: #{tpu_custom_call.1} parent=31 // pred_fallthru
          _
        %s241 = sand.u32 %s31, 1
        %s242 = scalar_lea.sflag [#allocation3], %s241
        %s243 = sand.u32 %s31, 1
        %s244 = smul.addr %s243, 64
        %s245 = scalar_lea.vmem [#allocation2], %s244
        %p246 = pneg %p44
        %p247 = pneg %p41
        %s248 = sand.u32 %s23, 1
        %s249 = scalar_lea.sflag [#allocation6], %s248
        %s250 = sand.u32 %s57, 1
        %s251 = smul.addr %s250, 64
        %s252 = scalar_lea.vmem [#allocation5], %s251
        %p253 = pneg %p70
        %p254 = pneg %p67
        %s255 = sand.u32 %s23, 1
        %s256 = scalar_lea.sflag [#allocation6], %s255
        %s257 = sand.u32 %s83, 1
        %s258 = smul.addr %s257, 64
        %s259 = scalar_lea.vmem [#allocation7], %s258
        %p260 = pneg %p96
        %p261 = pneg %p93
        %p262 = pneg %p122
        %p263 = pneg %p119
        %s264 = sand.u32 %s109, 1
        %s265 = scalar_lea.sflag [#allocation4], %s264
        %s266 = sand.u32 %s109, 1
        %s267 = smul.addr %s266, 64
        %s268 = scalar_lea.vmem [#allocation8], %s267
        %s269 = smul.u32 4, %s23
        %s270 = smul.u32 4, %s23
        %s271 = smul.u32 4, %s23
        %s272 = smul.u32 4, %s23
        %v273 = vld [vmem:[%s218] sm:$0xff]
        %v274 = vld [vmem:[%s218 + $0x8] sm:$0xff]
        %v275 = vld [vmem:[%s218 + $0x10] sm:$0xff]
        %v276 = vld [vmem:[%s218 + $0x18] sm:$0xff]
        %v277 = vld [vmem:[%s218 + $0x20] sm:$0xff]
        %v278 = vld [vmem:[%s218 + $0x28] sm:$0xff]
        %v279 = vld [vmem:[%s218 + $0x30] sm:$0xff]
        %v280 = vld [vmem:[%s218 + $0x38] sm:$0xff]
        %v281 = vld [vmem:[%s227] sm:$0xff]
        %v282 = vld [vmem:[%s227 + $0x8] sm:$0xff]
        %v283 = vld [vmem:[%s227 + $0x10] sm:$0xff]
        %v284 = vld [vmem:[%s227 + $0x18] sm:$0xff]
        %v285 = vld [vmem:[%s227 + $0x20] sm:$0xff]
        %v286 = vld [vmem:[%s227 + $0x28] sm:$0xff]
        %v287 = vld [vmem:[%s227 + $0x30] sm:$0xff]
        %v288 = vld [vmem:[%s227 + $0x38] sm:$0xff]
        %v289 = vld [vmem:[%s236] sm:$0xff]
        %v290 = vld [vmem:[%s236 + $0x8] sm:$0xff]
        %v291 = vld [vmem:[%s236 + $0x10] sm:$0xff]
        %v292 = vld [vmem:[%s236 + $0x18] sm:$0xff]
        %v293 = vld [vmem:[%s236 + $0x20] sm:$0xff]
        %v294 = vld [vmem:[%s236 + $0x28] sm:$0xff]
        %v295 = vld [vmem:[%s236 + $0x30] sm:$0xff]
        %v296 = vld [vmem:[%s236 + $0x38] sm:$0xff]
        %vm297 = vcmask 261120
        %v298 = vsel %vm297, %v273, -inf
        %299 = vmax.xlane.f32.xlu0 %v298
        %v300 = vpop.xlane.xlu0 %299
        %v301 = vsel %vm297, %v274, -inf
        %302 = vmax.xlane.f32.xlu0 %v301
        %v303 = vpop.xlane.xlu0 %302
        %v304 = vsel %vm297, %v275, -inf
        %305 = vmax.xlane.f32.xlu0 %v304
        %v306 = vpop.xlane.xlu0 %305
        %v307 = vsel %vm297, %v276, -inf
        %308 = vmax.xlane.f32.xlu0 %v307
        %v309 = vpop.xlane.xlu0 %308
        %v310 = vsel %vm297, %v277, -inf
        %311 = vmax.xlane.f32.xlu0 %v310
        %v312 = vpop.xlane.xlu0 %311
        %v313 = vsel %vm297, %v278, -inf
        %314 = vmax.xlane.f32.xlu0 %v313
        %v315 = vpop.xlane.xlu0 %314
        %v316 = vsel %vm297, %v279, -inf
        %317 = vmax.xlane.f32.xlu0 %v316
        %v318 = vpop.xlane.xlu0 %317
        %v319 = vsel %vm297, %v280, -inf
        %320 = vmax.xlane.f32.xlu0 %v319
        %v321 = vpop.xlane.xlu0 %320
        %v322 = vsub.f32 %v273, %v300
        %v323 = vsub.f32 %v274, %v303
        %v324 = vsub.f32 %v275, %v306
        %v325 = vsub.f32 %v276, %v309
        %v326 = vsub.f32 %v277, %v312
        %v327 = vsub.f32 %v278, %v315
        %v328 = vsub.f32 %v279, %v318
        %v329 = vsub.f32 %v280, %v321
        %v330 = vmul.f32 %v322, 1.442695
        %v331 = vpow.pop %v330
        %v332 = vmul.f32 %v323, 1.442695
        %v333 = vpow.pop %v332
        %v334 = vmul.f32 %v324, 1.442695
        %v335 = vpow.pop %v334
        %v336 = vmul.f32 %v325, 1.442695
        %v337 = vpow.pop %v336
        %v338 = vmul.f32 %v326, 1.442695
        %v339 = vpow.pop %v338
        %v340 = vmul.f32 %v327, 1.442695
        %v341 = vpow.pop %v340
        %v342 = vmul.f32 %v328, 1.442695
        %v343 = vpow.pop %v342
        %v344 = vmul.f32 %v329, 1.442695
        %v345 = vpow.pop %v344
        %v346 = vsel %vm297, %v331, 0.0
        %347 = vadd.xlane.f32.xlu0 %v346
        %v348 = vpop.xlane.xlu0 %347
        %v349 = vsel %vm297, %v333, 0.0
        %350 = vadd.xlane.f32.xlu0 %v349
        %v351 = vpop.xlane.xlu0 %350
        %v352 = vsel %vm297, %v335, 0.0
        %353 = vadd.xlane.f32.xlu0 %v352
        %v354 = vpop.xlane.xlu0 %353
        %v355 = vsel %vm297, %v337, 0.0
        %356 = vadd.xlane.f32.xlu0 %v355
        %v357 = vpop.xlane.xlu0 %356
        %v358 = vsel %vm297, %v339, 0.0
        %359 = vadd.xlane.f32.xlu0 %v358
        %v360 = vpop.xlane.xlu0 %359
        %v361 = vsel %vm297, %v341, 0.0
        %362 = vadd.xlane.f32.xlu0 %v361
        %v363 = vpop.xlane.xlu0 %362
        %v364 = vsel %vm297, %v343, 0.0
        %365 = vadd.xlane.f32.xlu0 %v364
        %v366 = vpop.xlane.xlu0 %365
        %v367 = vsel %vm297, %v345, 0.0
        %368 = vadd.xlane.f32.xlu0 %v367
        %v369 = vpop.xlane.xlu0 %368
        %v370 = vrcp.pop %v348
        %v371 = vrcp.pop %v351
        %v372 = vrcp.pop %v354
        %v373 = vrcp.pop %v357
        %v374 = vrcp.pop %v360
        %v375 = vrcp.pop %v363
        %v376 = vrcp.pop %v366
        %v377 = vrcp.pop %v369
        %v378 = vmul.f32 %v370, 0.17677669
        %v379 = vmul.f32 %v371, 0.17677669
        %v380 = vmul.f32 %v372, 0.17677669
        %v381 = vmul.f32 %v373, 0.17677669
        %v382 = vmul.f32 %v374, 0.17677669
        %v383 = vmul.f32 %v375, 0.17677669
        %v384 = vmul.f32 %v376, 0.17677669
        %v385 = vmul.f32 %v377, 0.17677669
        %v386 = vmul.f32 %v331, %v378
        %v387 = vmul.f32 %v333, %v379
        %v388 = vmul.f32 %v335, %v380
        %v389 = vmul.f32 %v337, %v381
        %v390 = vmul.f32 %v339, %v382
        %v391 = vmul.f32 %v341, %v383
        %v392 = vmul.f32 %v343, %v384
        %v393 = vmul.f32 %v345, %v385
        %v394 = vsel %vm297, %v281, -inf
        %v395 = vsel %vm297, %v282, -inf
        %v396 = vmax.f32 %v394, %v395
        %v397 = vrot.slane %v396, 4
        %v398 = vmax.f32 %v396, %v397
        %v399 = vrot.slane %v398, 2
        %v400 = vmax.f32 %v398, %v399
        %v401 = vrot.slane %v400, 1
        %v402 = vmax.f32 %v400, %v401
        %v403 = vsel %vm297, %v283, -inf
        %v404 = vsel %vm297, %v284, -inf
        %v405 = vmax.f32 %v403, %v404
        %v406 = vrot.slane %v405, 4
        %v407 = vmax.f32 %v405, %v406
        %v408 = vrot.slane %v407, 2
        %v409 = vmax.f32 %v407, %v408
        %v410 = vrot.slane %v409, 1
        %v411 = vmax.f32 %v409, %v410
        %v412 = vsel %vm297, %v285, -inf
        %v413 = vsel %vm297, %v286, -inf
        %v414 = vmax.f32 %v412, %v413
        %v415 = vrot.slane %v414, 4
        %v416 = vmax.f32 %v414, %v415
        %v417 = vrot.slane %v416, 2
        %v418 = vmax.f32 %v416, %v417
        %v419 = vrot.slane %v418, 1
        %v420 = vmax.f32 %v418, %v419
        %v421 = vsel %vm297, %v287, -inf
        %v422 = vsel %vm297, %v288, -inf
        %v423 = vmax.f32 %v421, %v422
        %v424 = vrot.slane %v423, 4
        %v425 = vmax.f32 %v423, %v424
        %v426 = vrot.slane %v425, 2
        %v427 = vmax.f32 %v425, %v426
        %v428 = vrot.slane %v427, 1
        %v429 = vmax.f32 %v427, %v428
        %v430 = vsub.f32 %v281, %v402
        %v431 = vsub.f32 %v282, %v402
        %v432 = vsub.f32 %v283, %v411
        %v433 = vsub.f32 %v284, %v411
        %v434 = vsub.f32 %v285, %v420
        %v435 = vsub.f32 %v286, %v420
        %v436 = vsub.f32 %v287, %v429
        %v437 = vsub.f32 %v288, %v429
        %v438 = vmul.f32 %v430, 1.442695
        %v439 = vpow.pop %v438
        %v440 = vmul.f32 %v431, 1.442695
        %v441 = vpow.pop %v440
        %v442 = vmul.f32 %v432, 1.442695
        %v443 = vpow.pop %v442
        %v444 = vmul.f32 %v433, 1.442695
        %v445 = vpow.pop %v444
        %v446 = vmul.f32 %v434, 1.442695
        %v447 = vpow.pop %v446
        %v448 = vmul.f32 %v435, 1.442695
        %v449 = vpow.pop %v448
        %v450 = vmul.f32 %v436, 1.442695
        %v451 = vpow.pop %v450
        %v452 = vmul.f32 %v437, 1.442695
        %v453 = vpow.pop %v452
        %v454 = vsel %vm297, %v439, 0.0
        %v455 = vsel %vm297, %v441, 0.0
        %v456 = vadd.f32 %v454, %v455
        %v457 = vrot.slane %v456, 4
        %v458 = vadd.f32 %v456, %v457
        %v459 = vrot.slane %v458, 2
        %v460 = vadd.f32 %v458, %v459
        %v461 = vrot.slane %v460, 1
        %v462 = vadd.f32 %v460, %v461
        %v463 = vsel %vm297, %v443, 0.0
        %v464 = vsel %vm297, %v445, 0.0
        %v465 = vadd.f32 %v463, %v464
        %v466 = vrot.slane %v465, 4
        %v467 = vadd.f32 %v465, %v466
        %v468 = vrot.slane %v467, 2
        %v469 = vadd.f32 %v467, %v468
        %v470 = vrot.slane %v469, 1
        %v471 = vadd.f32 %v469, %v470
        %v472 = vsel %vm297, %v447, 0.0
        %v473 = vsel %vm297, %v449, 0.0
        %v474 = vadd.f32 %v472, %v473
        %v475 = vrot.slane %v474, 4
        %v476 = vadd.f32 %v474, %v475
        %v477 = vrot.slane %v476, 2
        %v478 = vadd.f32 %v476, %v477
        %v479 = vrot.slane %v478, 1
        %v480 = vadd.f32 %v478, %v479
        %v481 = vsel %vm297, %v451, 0.0
        %v482 = vsel %vm297, %v453, 0.0
        %v483 = vadd.f32 %v481, %v482
        %v484 = vrot.slane %v483, 4
        %v485 = vadd.f32 %v483, %v484
        %v486 = vrot.slane %v485, 2
        %v487 = vadd.f32 %v485, %v486
        %v488 = vrot.slane %v487, 1
        %v489 = vadd.f32 %v487, %v488
        %v490 = vrcp.pop %v462
        %v491 = vrcp.pop %v471
        %v492 = vrcp.pop %v480
        %v493 = vrcp.pop %v489
        %v494 = vmul.f32 %v439, %v490
        %v495 = vmul.f32 %v441, %v490
        %v496 = vmul.f32 %v443, %v491
        %v497 = vmul.f32 %v445, %v491
        %v498 = vmul.f32 %v447, %v492
        %v499 = vmul.f32 %v449, %v492
        %v500 = vmul.f32 %v451, %v493
        %v501 = vmul.f32 %v453, %v493
        %502 = vxpose.xlu0.b32.start [1/16] %v494, 128
        %503 = vxpose.xlu0.b32.cont [2/16] %v495, 128
        %504 = vxpose.xlu0.b32.cont [3/16] 0.0, 128
        %505 = vxpose.xlu0.b32.cont [4/16] 0.0, 128
        %506 = vxpose.xlu0.b32.cont [5/16] 0.0, 128
        %507 = vxpose.xlu0.b32.cont [6/16] 0.0, 128
        %508 = vxpose.xlu0.b32.cont [7/16] 0.0, 128
        %509 = vxpose.xlu0.b32.cont [8/16] 0.0, 128
        %510 = vxpose.xlu0.b32.cont [9/16] 0.0, 128
        %511 = vxpose.xlu0.b32.cont [10/16] 0.0, 128
        %512 = vxpose.xlu0.b32.cont [11/16] 0.0, 128
        %513 = vxpose.xlu0.b32.cont [12/16] 0.0, 128
        %514 = vxpose.xlu0.b32.cont [13/16] 0.0, 128
        %515 = vxpose.xlu0.b32.cont [14/16] 0.0, 128
        %516 = vxpose.xlu0.b32.cont [15/16] 0.0, 128
        %517 = vxpose.xlu0.b32.end [16/16] 0.0, 128
        %v518 = vpop.trf.xlu0
        %v519 = vpop.trf.xlu0
        %v520 = vpop.trf.xlu0
        %v521 = vpop.trf.xlu0
        %v522 = vpop.trf.xlu0
        %v523 = vpop.trf.xlu0
        %v524 = vpop.trf.xlu0
        %v525 = vpop.trf.xlu0
        %v526 = vpop.trf.xlu0
        %v527 = vpop.trf.xlu0
        %v528 = vpop.trf.xlu0
        %v529 = vpop.trf.xlu0
        %v530 = vpop.trf.xlu0
        %v531 = vpop.trf.xlu0
        %v532 = vpop.trf.xlu0
        %v533 = vpop.trf.xlu0
        %vm534 = vcmask 130048
        %v536 = vsel %vm534, %v518, 0
        %v539 = vsel %vm534, %v519, 0
        %v542 = vsel %vm534, %v520, 0
        %v545 = vsel %vm534, %v521, 0
        %547 = vmatprep.subr.mxu0 0.0
        %548 = vmatpush1.msra.mxu0 0.0
        %549 = vmatprep.subr.mxu0 0.0
        %550 = vmatpush1.msra.mxu0 0.0
        %551 = vmatprep.subr.mxu0 0.0
        %552 = vmatpush1.msra.mxu0 0.0
        %553 = vmatprep.subr.mxu0 0.0
        %554 = vmatpush1.msra.mxu0 0.0
        %555 = vmatprep.subr.mxu0 0.0
        %556 = vmatpush1.msra.mxu0 0.0
        %557 = vmatprep.subr.mxu0 0.0
        %558 = vmatpush1.msra.mxu0 0.0
        %559 = vmatprep.subr.mxu0 0.0
        %560 = vmatpush1.msra.mxu0 0.0
        %561 = vmatprep.subr.mxu0 0.0
        %562 = vmatpush1.msra.mxu0 0.0
        %563 = vmatprep.subr.mxu0 0.0
        %564 = vmatpush1.msra.mxu0 0.0
        %565 = vmatprep.subr.mxu0 0.0
        %566 = vmatpush1.msra.mxu0 0.0
        %567 = vmatprep.subr.mxu0 0.0
        %568 = vmatpush1.msra.mxu0 0.0
        %569 = vmatprep.subr.mxu0 0.0
        %570 = vmatpush1.msra.mxu0 0.0
        %571 = vmatprep.subr.mxu0 0.0
        %572 = vmatpush1.msra.mxu0 0.0
        %573 = vmatprep.subr.mxu0 0.0
        %574 = vmatpush1.msra.mxu0 0.0
        %575 = vmatprep.subr.mxu0 0.0
        %576 = vmatpush1.msra.mxu0 %v290
        %577 = vmatprep.subr.mxu0 0.0
        %578 = vmatpush1.msra.mxu0 %v289
        %579 = vmatprep.subr.mxu0 0.0
        %580 = vmatpush2.msra.mxu0 0.0
        %581 = vmatprep.subr.mxu0 0.0
        %582 = vmatpush2.msra.mxu0 0.0
        %583 = vmatprep.subr.mxu0 0.0
        %584 = vmatpush2.msra.mxu0 0.0
        %585 = vmatprep.subr.mxu0 0.0
        %586 = vmatpush2.msra.mxu0 0.0
        %587 = vmatprep.subr.mxu0 0.0
        %588 = vmatpush2.msra.mxu0 0.0
        %589 = vmatprep.subr.mxu0 0.0
        %590 = vmatpush2.msra.mxu0 0.0
        %591 = vmatprep.subr.mxu0 0.0
        %592 = vmatpush2.msra.mxu0 0.0
        %593 = vmatprep.subr.mxu0 0.0
        %594 = vmatpush2.msra.mxu0 0.0
        %595 = vmatprep.subr.mxu0 0.0
        %596 = vmatpush2.msra.mxu0 0.0
        %597 = vmatprep.subr.mxu0 0.0
        %598 = vmatpush2.msra.mxu0 0.0
        %599 = vmatprep.subr.mxu0 0.0
        %600 = vmatpush2.msra.mxu0 0.0
        %601 = vmatprep.subr.mxu0 0.0
        %602 = vmatpush2.msra.mxu0 0.0
        %603 = vmatprep.subr.mxu0 0.0
        %604 = vmatpush2.msra.mxu0 0.0
        %605 = vmatprep.subr.mxu0 0.0
        %606 = vmatpush2.msra.mxu0 0.0
        %607 = vmatprep.subr.mxu0 0.0
        %608 = vmatpush2.msra.mxu0 0.0
        %609 = vmatprep.subr.mxu0 0.0
        %610 = vmatpush2.msra.mxu0 0.0
        %611 = vmatprep.mubr.f32.mxu0 0.0
        %612 = vmatmul.mubr.f32.gmra.mxu0 %v536
        %v613 = vpop.f32.mrf.mxu0
        %v614 = vadd.f32 0.0, %v613
        %v615 = vpop.f32.mrf.mxu0
        %616 = vmatprep.mubr.f32.mxu0 0.0
        %617 = vmatmul.mubr.f32.gmra.mxu0 %v539
        %v618 = vpop.f32.mrf.mxu0
        %v619 = vadd.f32 0.0, %v618
        %v620 = vpop.f32.mrf.mxu0
        %621 = vmatprep.mubr.f32.mxu0 0.0
        %622 = vmatmul.mubr.f32.gmra.mxu0 %v542
        %v623 = vpop.f32.mrf.mxu0
        %v624 = vadd.f32 0.0, %v623
        %v625 = vpop.f32.mrf.mxu0
        %626 = vmatprep.mubr.f32.mxu0 0.0
        %627 = vmatmul.mubr.f32.gmra.mxu0 %v545
        %v628 = vpop.f32.mrf.mxu0
        %v629 = vadd.f32 0.0, %v628
        %v630 = vpop.f32.mrf.mxu0
        %631 = vdwg.mxu0
        %632 = vxpose.xlu0.b32.start [1/16] %v496, 128
        %633 = vxpose.xlu0.b32.cont [2/16] %v497, 128
        %634 = vxpose.xlu0.b32.cont [3/16] 0.0, 128
        %635 = vxpose.xlu0.b32.cont [4/16] 0.0, 128
        %636 = vxpose.xlu0.b32.cont [5/16] 0.0, 128
        %637 = vxpose.xlu0.b32.cont [6/16] 0.0, 128
        %638 = vxpose.xlu0.b32.cont [7/16] 0.0, 128
        %639 = vxpose.xlu0.b32.cont [8/16] 0.0, 128
        %640 = vxpose.xlu0.b32.cont [9/16] 0.0, 128
        %641 = vxpose.xlu0.b32.cont [10/16] 0.0, 128
        %642 = vxpose.xlu0.b32.cont [11/16] 0.0, 128
        %643 = vxpose.xlu0.b32.cont [12/16] 0.0, 128
        %644 = vxpose.xlu0.b32.cont [13/16] 0.0, 128
        %645 = vxpose.xlu0.b32.cont [14/16] 0.0, 128
        %646 = vxpose.xlu0.b32.cont [15/16] 0.0, 128
        %647 = vxpose.xlu0.b32.end [16/16] 0.0, 128
        %v648 = vpop.trf.xlu0
        %v649 = vpop.trf.xlu0
        %v650 = vpop.trf.xlu0
        %v651 = vpop.trf.xlu0
        %v652 = vpop.trf.xlu0
        %v653 = vpop.trf.xlu0
        %v654 = vpop.trf.xlu0
        %v655 = vpop.trf.xlu0
        %v656 = vpop.trf.xlu0
        %v657 = vpop.trf.xlu0
        %v658 = vpop.trf.xlu0
        %v659 = vpop.trf.xlu0
        %v660 = vpop.trf.xlu0
        %v661 = vpop.trf.xlu0
        %v662 = vpop.trf.xlu0
        %v663 = vpop.trf.xlu0
        %v665 = vsel %vm534, %v648, 0
        %v668 = vsel %vm534, %v649, 0
        %v671 = vsel %vm534, %v650, 0
        %v674 = vsel %vm534, %v651, 0
        %676 = vmatprep.subr.mxu0 0.0
        %677 = vmatpush1.msra.mxu0 0.0
        %678 = vmatprep.subr.mxu0 0.0
        %679 = vmatpush1.msra.mxu0 0.0
        %680 = vmatprep.subr.mxu0 0.0
        %681 = vmatpush1.msra.mxu0 0.0
        %682 = vmatprep.subr.mxu0 0.0
        %683 = vmatpush1.msra.mxu0 0.0
        %684 = vmatprep.subr.mxu0 0.0
        %685 = vmatpush1.msra.mxu0 0.0
        %686 = vmatprep.subr.mxu0 0.0
        %687 = vmatpush1.msra.mxu0 0.0
        %688 = vmatprep.subr.mxu0 0.0
        %689 = vmatpush1.msra.mxu0 0.0
        %690 = vmatprep.subr.mxu0 0.0
        %691 = vmatpush1.msra.mxu0 0.0
        %692 = vmatprep.subr.mxu0 0.0
        %693 = vmatpush1.msra.mxu0 0.0
        %694 = vmatprep.subr.mxu0 0.0
        %695 = vmatpush1.msra.mxu0 0.0
        %696 = vmatprep.subr.mxu0 0.0
        %697 = vmatpush1.msra.mxu0 0.0
        %698 = vmatprep.subr.mxu0 0.0
        %699 = vmatpush1.msra.mxu0 0.0
        %700 = vmatprep.subr.mxu0 0.0
        %701 = vmatpush1.msra.mxu0 0.0
        %702 = vmatprep.subr.mxu0 0.0
        %703 = vmatpush1.msra.mxu0 0.0
        %704 = vmatprep.subr.mxu0 0.0
        %705 = vmatpush1.msra.mxu0 %v292
        %706 = vmatprep.subr.mxu0 0.0
        %707 = vmatpush1.msra.mxu0 %v291
        %708 = vmatprep.subr.mxu0 0.0
        %709 = vmatpush2.msra.mxu0 0.0
        %710 = vmatprep.subr.mxu0 0.0
        %711 = vmatpush2.msra.mxu0 0.0
        %712 = vmatprep.subr.mxu0 0.0
        %713 = vmatpush2.msra.mxu0 0.0
        %714 = vmatprep.subr.mxu0 0.0
        %715 = vmatpush2.msra.mxu0 0.0
        %716 = vmatprep.subr.mxu0 0.0
        %717 = vmatpush2.msra.mxu0 0.0
        %718 = vmatprep.subr.mxu0 0.0
        %719 = vmatpush2.msra.mxu0 0.0
        %720 = vmatprep.subr.mxu0 0.0
        %721 = vmatpush2.msra.mxu0 0.0
        %722 = vmatprep.subr.mxu0 0.0
        %723 = vmatpush2.msra.mxu0 0.0
        %724 = vmatprep.subr.mxu0 0.0
        %725 = vmatpush2.msra.mxu0 0.0
        %726 = vmatprep.subr.mxu0 0.0
        %727 = vmatpush2.msra.mxu0 0.0
        %728 = vmatprep.subr.mxu0 0.0
        %729 = vmatpush2.msra.mxu0 0.0
        %730 = vmatprep.subr.mxu0 0.0
        %731 = vmatpush2.msra.mxu0 0.0
        %732 = vmatprep.subr.mxu0 0.0
        %733 = vmatpush2.msra.mxu0 0.0
        %734 = vmatprep.subr.mxu0 0.0
        %735 = vmatpush2.msra.mxu0 0.0
        %736 = vmatprep.subr.mxu0 0.0
        %737 = vmatpush2.msra.mxu0 0.0
        %738 = vmatprep.subr.mxu0 0.0
        %739 = vmatpush2.msra.mxu0 0.0
        %740 = vmatprep.mubr.f32.mxu0 0.0
        %741 = vmatmul.mubr.f32.gmra.mxu0 %v665
        %v742 = vpop.f32.mrf.mxu0
        %v743 = vadd.f32 0.0, %v742
        %v744 = vpop.f32.mrf.mxu0
        %745 = vmatprep.mubr.f32.mxu0 0.0
        %746 = vmatmul.mubr.f32.gmra.mxu0 %v668
        %v747 = vpop.f32.mrf.mxu0
        %v748 = vadd.f32 0.0, %v747
        %v749 = vpop.f32.mrf.mxu0
        %750 = vmatprep.mubr.f32.mxu0 0.0
        %751 = vmatmul.mubr.f32.gmra.mxu0 %v671
        %v752 = vpop.f32.mrf.mxu0
        %v753 = vadd.f32 0.0, %v752
        %v754 = vpop.f32.mrf.mxu0
        %755 = vmatprep.mubr.f32.mxu0 0.0
        %756 = vmatmul.mubr.f32.gmra.mxu0 %v674
        %v757 = vpop.f32.mrf.mxu0
        %v758 = vadd.f32 0.0, %v757
        %v759 = vpop.f32.mrf.mxu0
        %760 = vdwg.mxu0
        %761 = vxpose.xlu0.b32.start [1/16] %v498, 128
        %762 = vxpose.xlu0.b32.cont [2/16] %v499, 128
        %763 = vxpose.xlu0.b32.cont [3/16] 0.0, 128
        %764 = vxpose.xlu0.b32.cont [4/16] 0.0, 128
        %765 = vxpose.xlu0.b32.cont [5/16] 0.0, 128
        %766 = vxpose.xlu0.b32.cont [6/16] 0.0, 128
        %767 = vxpose.xlu0.b32.cont [7/16] 0.0, 128
        %768 = vxpose.xlu0.b32.cont [8/16] 0.0, 128
        %769 = vxpose.xlu0.b32.cont [9/16] 0.0, 128
        %770 = vxpose.xlu0.b32.cont [10/16] 0.0, 128
        %771 = vxpose.xlu0.b32.cont [11/16] 0.0, 128
        %772 = vxpose.xlu0.b32.cont [12/16] 0.0, 128
        %773 = vxpose.xlu0.b32.cont [13/16] 0.0, 128
        %774 = vxpose.xlu0.b32.cont [14/16] 0.0, 128
        %775 = vxpose.xlu0.b32.cont [15/16] 0.0, 128
        %776 = vxpose.xlu0.b32.end [16/16] 0.0, 128
        %v777 = vpop.trf.xlu0
        %v778 = vpop.trf.xlu0
        %v779 = vpop.trf.xlu0
        %v780 = vpop.trf.xlu0
        %v781 = vpop.trf.xlu0
        %v782 = vpop.trf.xlu0
        %v783 = vpop.trf.xlu0
        %v784 = vpop.trf.xlu0
        %v785 = vpop.trf.xlu0
        %v786 = vpop.trf.xlu0
        %v787 = vpop.trf.xlu0
        %v788 = vpop.trf.xlu0
        %v789 = vpop.trf.xlu0
        %v790 = vpop.trf.xlu0
        %v791 = vpop.trf.xlu0
        %v792 = vpop.trf.xlu0
        %v794 = vsel %vm534, %v777, 0
        %v797 = vsel %vm534, %v778, 0
        %v800 = vsel %vm534, %v779, 0
        %v803 = vsel %vm534, %v780, 0
        %805 = vmatprep.subr.mxu0 0.0
        %806 = vmatpush1.msra.mxu0 0.0
        %807 = vmatprep.subr.mxu0 0.0
        %808 = vmatpush1.msra.mxu0 0.0
        %809 = vmatprep.subr.mxu0 0.0
        %810 = vmatpush1.msra.mxu0 0.0
        %811 = vmatprep.subr.mxu0 0.0
        %812 = vmatpush1.msra.mxu0 0.0
        %813 = vmatprep.subr.mxu0 0.0
        %814 = vmatpush1.msra.mxu0 0.0
        %815 = vmatprep.subr.mxu0 0.0
        %816 = vmatpush1.msra.mxu0 0.0
        %817 = vmatprep.subr.mxu0 0.0
        %818 = vmatpush1.msra.mxu0 0.0
        %819 = vmatprep.subr.mxu0 0.0
        %820 = vmatpush1.msra.mxu0 0.0
        %821 = vmatprep.subr.mxu0 0.0
        %822 = vmatpush1.msra.mxu0 0.0
        %823 = vmatprep.subr.mxu0 0.0
        %824 = vmatpush1.msra.mxu0 0.0
        %825 = vmatprep.subr.mxu0 0.0
        %826 = vmatpush1.msra.mxu0 0.0
        %827 = vmatprep.subr.mxu0 0.0
        %828 = vmatpush1.msra.mxu0 0.0
        %829 = vmatprep.subr.mxu0 0.0
        %830 = vmatpush1.msra.mxu0 0.0
        %831 = vmatprep.subr.mxu0 0.0
        %832 = vmatpush1.msra.mxu0 0.0
        %833 = vmatprep.subr.mxu0 0.0
        %834 = vmatpush1.msra.mxu0 %v294
        %835 = vmatprep.subr.mxu0 0.0
        %836 = vmatpush1.msra.mxu0 %v293
        %837 = vmatprep.subr.mxu0 0.0
        %838 = vmatpush2.msra.mxu0 0.0
        %839 = vmatprep.subr.mxu0 0.0
        %840 = vmatpush2.msra.mxu0 0.0
        %841 = vmatprep.subr.mxu0 0.0
        %842 = vmatpush2.msra.mxu0 0.0
        %843 = vmatprep.subr.mxu0 0.0
        %844 = vmatpush2.msra.mxu0 0.0
        %845 = vmatprep.subr.mxu0 0.0
        %846 = vmatpush2.msra.mxu0 0.0
        %847 = vmatprep.subr.mxu0 0.0
        %848 = vmatpush2.msra.mxu0 0.0
        %849 = vmatprep.subr.mxu0 0.0
        %850 = vmatpush2.msra.mxu0 0.0
        %851 = vmatprep.subr.mxu0 0.0
        %852 = vmatpush2.msra.mxu0 0.0
        %853 = vmatprep.subr.mxu0 0.0
        %854 = vmatpush2.msra.mxu0 0.0
        %855 = vmatprep.subr.mxu0 0.0
        %856 = vmatpush2.msra.mxu0 0.0
        %857 = vmatprep.subr.mxu0 0.0
        %858 = vmatpush2.msra.mxu0 0.0
        %859 = vmatprep.subr.mxu0 0.0
        %860 = vmatpush2.msra.mxu0 0.0
        %861 = vmatprep.subr.mxu0 0.0
        %862 = vmatpush2.msra.mxu0 0.0
        %863 = vmatprep.subr.mxu0 0.0
        %864 = vmatpush2.msra.mxu0 0.0
        %865 = vmatprep.subr.mxu0 0.0
        %866 = vmatpush2.msra.mxu0 0.0
        %867 = vmatprep.subr.mxu0 0.0
        %868 = vmatpush2.msra.mxu0 0.0
        %869 = vmatprep.mubr.f32.mxu0 0.0
        %870 = vmatmul.mubr.f32.gmra.mxu0 %v794
        %v871 = vpop.f32.mrf.mxu0
        %v872 = vadd.f32 0.0, %v871
        %v873 = vpop.f32.mrf.mxu0
        %874 = vmatprep.mubr.f32.mxu0 0.0
        %875 = vmatmul.mubr.f32.gmra.mxu0 %v797
        %v876 = vpop.f32.mrf.mxu0
        %v877 = vadd.f32 0.0, %v876
        %v878 = vpop.f32.mrf.mxu0
        %879 = vmatprep.mubr.f32.mxu0 0.0
        %880 = vmatmul.mubr.f32.gmra.mxu0 %v800
        %v881 = vpop.f32.mrf.mxu0
        %v882 = vadd.f32 0.0, %v881
        %v883 = vpop.f32.mrf.mxu0
        %884 = vmatprep.mubr.f32.mxu0 0.0
        %885 = vmatmul.mubr.f32.gmra.mxu0 %v803
        %v886 = vpop.f32.mrf.mxu0
        %v887 = vadd.f32 0.0, %v886
        %v888 = vpop.f32.mrf.mxu0
        %889 = vdwg.mxu0
        %890 = vxpose.xlu0.b32.start [1/16] %v500, 128
        %891 = vxpose.xlu0.b32.cont [2/16] %v501, 128
        %892 = vxpose.xlu0.b32.cont [3/16] 0.0, 128
        %893 = vxpose.xlu0.b32.cont [4/16] 0.0, 128
        %894 = vxpose.xlu0.b32.cont [5/16] 0.0, 128
        %895 = vxpose.xlu0.b32.cont [6/16] 0.0, 128
        %896 = vxpose.xlu0.b32.cont [7/16] 0.0, 128
        %897 = vxpose.xlu0.b32.cont [8/16] 0.0, 128
        %898 = vxpose.xlu0.b32.cont [9/16] 0.0, 128
        %899 = vxpose.xlu0.b32.cont [10/16] 0.0, 128
        %900 = vxpose.xlu0.b32.cont [11/16] 0.0, 128
        %901 = vxpose.xlu0.b32.cont [12/16] 0.0, 128
        %902 = vxpose.xlu0.b32.cont [13/16] 0.0, 128
        %903 = vxpose.xlu0.b32.cont [14/16] 0.0, 128
        %904 = vxpose.xlu0.b32.cont [15/16] 0.0, 128
        %905 = vxpose.xlu0.b32.end [16/16] 0.0, 128
        %v906 = vpop.trf.xlu0
        %v907 = vpop.trf.xlu0
        %v908 = vpop.trf.xlu0
        %v909 = vpop.trf.xlu0
        %v910 = vpop.trf.xlu0
        %v911 = vpop.trf.xlu0
        %v912 = vpop.trf.xlu0
        %v913 = vpop.trf.xlu0
        %v914 = vpop.trf.xlu0
        %v915 = vpop.trf.xlu0
        %v916 = vpop.trf.xlu0
        %v917 = vpop.trf.xlu0
        %v918 = vpop.trf.xlu0
        %v919 = vpop.trf.xlu0
        %v920 = vpop.trf.xlu0
        %v921 = vpop.trf.xlu0
        %v923 = vsel %vm534, %v906, 0
        %v926 = vsel %vm534, %v907, 0
        %v929 = vsel %vm534, %v908, 0
        %v932 = vsel %vm534, %v909, 0
        %934 = vmatprep.subr.mxu0 0.0
        %935 = vmatpush1.msra.mxu0 0.0
        %936 = vmatprep.subr.mxu0 0.0
        %937 = vmatpush1.msra.mxu0 0.0
        %938 = vmatprep.subr.mxu0 0.0
        %939 = vmatpush1.msra.mxu0 0.0
        %940 = vmatprep.subr.mxu0 0.0
        %941 = vmatpush1.msra.mxu0 0.0
        %942 = vmatprep.subr.mxu0 0.0
        %943 = vmatpush1.msra.mxu0 0.0
        %944 = vmatprep.subr.mxu0 0.0
        %945 = vmatpush1.msra.mxu0 0.0
        %946 = vmatprep.subr.mxu0 0.0
        %947 = vmatpush1.msra.mxu0 0.0
        %948 = vmatprep.subr.mxu0 0.0
        %949 = vmatpush1.msra.mxu0 0.0
        %950 = vmatprep.subr.mxu0 0.0
        %951 = vmatpush1.msra.mxu0 0.0
        %952 = vmatprep.subr.mxu0 0.0
        %953 = vmatpush1.msra.mxu0 0.0
        %954 = vmatprep.subr.mxu0 0.0
        %955 = vmatpush1.msra.mxu0 0.0
        %956 = vmatprep.subr.mxu0 0.0
        %957 = vmatpush1.msra.mxu0 0.0
        %958 = vmatprep.subr.mxu0 0.0
        %959 = vmatpush1.msra.mxu0 0.0
        %960 = vmatprep.subr.mxu0 0.0
        %961 = vmatpush1.msra.mxu0 0.0
        %962 = vmatprep.subr.mxu0 0.0
        %963 = vmatpush1.msra.mxu0 %v296
        %964 = vmatprep.subr.mxu0 0.0
        %965 = vmatpush1.msra.mxu0 %v295
        %966 = vmatprep.subr.mxu0 0.0
        %967 = vmatpush2.msra.mxu0 0.0
        %968 = vmatprep.subr.mxu0 0.0
        %969 = vmatpush2.msra.mxu0 0.0
        %970 = vmatprep.subr.mxu0 0.0
        %971 = vmatpush2.msra.mxu0 0.0
        %972 = vmatprep.subr.mxu0 0.0
        %973 = vmatpush2.msra.mxu0 0.0
        %974 = vmatprep.subr.mxu0 0.0
        %975 = vmatpush2.msra.mxu0 0.0
        %976 = vmatprep.subr.mxu0 0.0
        %977 = vmatpush2.msra.mxu0 0.0
        %978 = vmatprep.subr.mxu0 0.0
        %979 = vmatpush2.msra.mxu0 0.0
        %980 = vmatprep.subr.mxu0 0.0
        %981 = vmatpush2.msra.mxu0 0.0
        %982 = vmatprep.subr.mxu0 0.0
        %983 = vmatpush2.msra.mxu0 0.0
        %984 = vmatprep.subr.mxu0 0.0
        %985 = vmatpush2.msra.mxu0 0.0
        %986 = vmatprep.subr.mxu0 0.0
        %987 = vmatpush2.msra.mxu0 0.0
        %988 = vmatprep.subr.mxu0 0.0
        %989 = vmatpush2.msra.mxu0 0.0
        %990 = vmatprep.subr.mxu0 0.0
        %991 = vmatpush2.msra.mxu0 0.0
        %992 = vmatprep.subr.mxu0 0.0
        %993 = vmatpush2.msra.mxu0 0.0
        %994 = vmatprep.subr.mxu0 0.0
        %995 = vmatpush2.msra.mxu0 0.0
        %996 = vmatprep.subr.mxu0 0.0
        %997 = vmatpush2.msra.mxu0 0.0
        %998 = vmatprep.mubr.f32.mxu0 0.0
        %999 = vmatmul.mubr.f32.gmra.mxu0 %v923
        %v1000 = vpop.f32.mrf.mxu0
        %v1001 = vadd.f32 0.0, %v1000
        %v1002 = vpop.f32.mrf.mxu0
        %1003 = vmatprep.mubr.f32.mxu0 0.0
        %1004 = vmatmul.mubr.f32.gmra.mxu0 %v926
        %v1005 = vpop.f32.mrf.mxu0
        %v1006 = vadd.f32 0.0, %v1005
        %v1007 = vpop.f32.mrf.mxu0
        %1008 = vmatprep.mubr.f32.mxu0 0.0
        %1009 = vmatmul.mubr.f32.gmra.mxu0 %v929
        %v1010 = vpop.f32.mrf.mxu0
        %v1011 = vadd.f32 0.0, %v1010
        %v1012 = vpop.f32.mrf.mxu0
        %1013 = vmatprep.mubr.f32.mxu0 0.0
        %1014 = vmatmul.mubr.f32.gmra.mxu0 %v932
        %v1015 = vpop.f32.mrf.mxu0
        %v1016 = vadd.f32 0.0, %v1015
        %v1017 = vpop.f32.mrf.mxu0
        %1018 = vdwg.mxu0
        %v1020 = vsel %vm297, %v386, 0
        %v1023 = vsel %vm297, %v387, 0
        %1025 = vmatprep.subr.mxu0 0.0
        %1026 = vmatpush1.msra.mxu0 0.0
        %1027 = vmatprep.subr.mxu0 0.0
        %1028 = vmatpush1.msra.mxu0 0.0
        %1029 = vmatprep.subr.mxu0 0.0
        %1030 = vmatpush1.msra.mxu0 0.0
        %1031 = vmatprep.subr.mxu0 0.0
        %1032 = vmatpush1.msra.mxu0 0.0
        %1033 = vmatprep.subr.mxu0 0.0
        %1034 = vmatpush1.msra.mxu0 0.0
        %1035 = vmatprep.subr.mxu0 0.0
        %1036 = vmatpush1.msra.mxu0 0.0
        %1037 = vmatprep.subr.mxu0 0.0
        %1038 = vmatpush1.msra.mxu0 0.0
        %1039 = vmatprep.subr.mxu0 0.0
        %1040 = vmatpush1.msra.mxu0 0.0
        %1041 = vmatprep.subr.mxu0 0.0
        %1042 = vmatpush1.msra.mxu0 0.0
        %1043 = vmatprep.subr.mxu0 0.0
        %1044 = vmatpush1.msra.mxu0 0.0
        %1045 = vmatprep.subr.mxu0 0.0
        %1046 = vmatpush1.msra.mxu0 0.0
        %1047 = vmatprep.subr.mxu0 0.0
        %1048 = vmatpush1.msra.mxu0 0.0
        %1049 = vmatprep.subr.mxu0 0.0
        %1050 = vmatpush1.msra.mxu0 %v629
        %1051 = vmatprep.subr.mxu0 0.0
        %1052 = vmatpush1.msra.mxu0 %v624
        %1053 = vmatprep.subr.mxu0 0.0
        %1054 = vmatpush1.msra.mxu0 %v619
        %1055 = vmatprep.subr.mxu0 0.0
        %1056 = vmatpush1.msra.mxu0 %v614
        %1057 = vmatprep.subr.mxu0 0.0
        %1058 = vmatpush2.msra.mxu0 0.0
        %1059 = vmatprep.subr.mxu0 0.0
        %1060 = vmatpush2.msra.mxu0 0.0
        %1061 = vmatprep.subr.mxu0 0.0
        %1062 = vmatpush2.msra.mxu0 0.0
        %1063 = vmatprep.subr.mxu0 0.0
        %1064 = vmatpush2.msra.mxu0 0.0
        %1065 = vmatprep.subr.mxu0 0.0
        %1066 = vmatpush2.msra.mxu0 0.0
        %1067 = vmatprep.subr.mxu0 0.0
        %1068 = vmatpush2.msra.mxu0 0.0
        %1069 = vmatprep.subr.mxu0 0.0
        %1070 = vmatpush2.msra.mxu0 0.0
        %1071 = vmatprep.subr.mxu0 0.0
        %1072 = vmatpush2.msra.mxu0 0.0
        %1073 = vmatprep.subr.mxu0 0.0
        %1074 = vmatpush2.msra.mxu0 0.0
        %1075 = vmatprep.subr.mxu0 0.0
        %1076 = vmatpush2.msra.mxu0 0.0
        %1077 = vmatprep.subr.mxu0 0.0
        %1078 = vmatpush2.msra.mxu0 0.0
        %1079 = vmatprep.subr.mxu0 0.0
        %1080 = vmatpush2.msra.mxu0 0.0
        %1081 = vmatprep.subr.mxu0 0.0
        %1082 = vmatpush2.msra.mxu0 0.0
        %1083 = vmatprep.subr.mxu0 0.0
        %1084 = vmatpush2.msra.mxu0 0.0
        %1085 = vmatprep.subr.mxu0 0.0
        %1086 = vmatpush2.msra.mxu0 0.0
        %1087 = vmatprep.subr.mxu0 0.0
        %1088 = vmatpush2.msra.mxu0 0.0
        %1089 = vmatprep.mubr.f32.mxu0 0.0
        %1090 = vmatmul.mubr.f32.gmra.mxu0 %v1020
        %v1091 = vpop.f32.mrf.mxu0
        %v1092 = vadd.f32 0.0, %v1091
        %v1093 = vpop.f32.mrf.mxu0
        %1094 = vmatprep.mubr.f32.mxu0 0.0
        %1095 = vmatmul.mubr.f32.gmra.mxu0 %v1023
        %v1096 = vpop.f32.mrf.mxu0
        %v1097 = vadd.f32 0.0, %v1096
        %v1098 = vpop.f32.mrf.mxu0
        %1099 = vdwg.mxu0
        %v1101 = vsel %vm297, %v388, 0
        %v1104 = vsel %vm297, %v389, 0
        %1106 = vmatprep.subr.mxu0 0.0
        %1107 = vmatpush1.msra.mxu0 0.0
        %1108 = vmatprep.subr.mxu0 0.0
        %1109 = vmatpush1.msra.mxu0 0.0
        %1110 = vmatprep.subr.mxu0 0.0
        %1111 = vmatpush1.msra.mxu0 0.0
        %1112 = vmatprep.subr.mxu0 0.0
        %1113 = vmatpush1.msra.mxu0 0.0
        %1114 = vmatprep.subr.mxu0 0.0
        %1115 = vmatpush1.msra.mxu0 0.0
        %1116 = vmatprep.subr.mxu0 0.0
        %1117 = vmatpush1.msra.mxu0 0.0
        %1118 = vmatprep.subr.mxu0 0.0
        %1119 = vmatpush1.msra.mxu0 0.0
        %1120 = vmatprep.subr.mxu0 0.0
        %1121 = vmatpush1.msra.mxu0 0.0
        %1122 = vmatprep.subr.mxu0 0.0
        %1123 = vmatpush1.msra.mxu0 0.0
        %1124 = vmatprep.subr.mxu0 0.0
        %1125 = vmatpush1.msra.mxu0 0.0
        %1126 = vmatprep.subr.mxu0 0.0
        %1127 = vmatpush1.msra.mxu0 0.0
        %1128 = vmatprep.subr.mxu0 0.0
        %1129 = vmatpush1.msra.mxu0 0.0
        %1130 = vmatprep.subr.mxu0 0.0
        %1131 = vmatpush1.msra.mxu0 %v758
        %1132 = vmatprep.subr.mxu0 0.0
        %1133 = vmatpush1.msra.mxu0 %v753
        %1134 = vmatprep.subr.mxu0 0.0
        %1135 = vmatpush1.msra.mxu0 %v748
        %1136 = vmatprep.subr.mxu0 0.0
        %1137 = vmatpush1.msra.mxu0 %v743
        %1138 = vmatprep.subr.mxu0 0.0
        %1139 = vmatpush2.msra.mxu0 0.0
        %1140 = vmatprep.subr.mxu0 0.0
        %1141 = vmatpush2.msra.mxu0 0.0
        %1142 = vmatprep.subr.mxu0 0.0
        %1143 = vmatpush2.msra.mxu0 0.0
        %1144 = vmatprep.subr.mxu0 0.0
        %1145 = vmatpush2.msra.mxu0 0.0
        %1146 = vmatprep.subr.mxu0 0.0
        %1147 = vmatpush2.msra.mxu0 0.0
        %1148 = vmatprep.subr.mxu0 0.0
        %1149 = vmatpush2.msra.mxu0 0.0
        %1150 = vmatprep.subr.mxu0 0.0
        %1151 = vmatpush2.msra.mxu0 0.0
        %1152 = vmatprep.subr.mxu0 0.0
        %1153 = vmatpush2.msra.mxu0 0.0
        %1154 = vmatprep.subr.mxu0 0.0
        %1155 = vmatpush2.msra.mxu0 0.0
        %1156 = vmatprep.subr.mxu0 0.0
        %1157 = vmatpush2.msra.mxu0 0.0
        %1158 = vmatprep.subr.mxu0 0.0
        %1159 = vmatpush2.msra.mxu0 0.0
        %1160 = vmatprep.subr.mxu0 0.0
        %1161 = vmatpush2.msra.mxu0 0.0
        %1162 = vmatprep.subr.mxu0 0.0
        %1163 = vmatpush2.msra.mxu0 0.0
        %1164 = vmatprep.subr.mxu0 0.0
        %1165 = vmatpush2.msra.mxu0 0.0
        %1166 = vmatprep.subr.mxu0 0.0
        %1167 = vmatpush2.msra.mxu0 0.0
        %1168 = vmatprep.subr.mxu0 0.0
        %1169 = vmatpush2.msra.mxu0 0.0
        %1170 = vmatprep.mubr.f32.mxu0 0.0
        %1171 = vmatmul.mubr.f32.gmra.mxu0 %v1101
        %v1172 = vpop.f32.mrf.mxu0
        %v1173 = vadd.f32 0.0, %v1172
        %v1174 = vpop.f32.mrf.mxu0
        %1175 = vmatprep.mubr.f32.mxu0 0.0
        %1176 = vmatmul.mubr.f32.gmra.mxu0 %v1104
        %v1177 = vpop.f32.mrf.mxu0
        %v1178 = vadd.f32 0.0, %v1177
        %v1179 = vpop.f32.mrf.mxu0
        %1180 = vdwg.mxu0
        %v1182 = vsel %vm297, %v390, 0
        %v1185 = vsel %vm297, %v391, 0
        %1187 = vmatprep.subr.mxu0 0.0
        %1188 = vmatpush1.msra.mxu0 0.0
        %1189 = vmatprep.subr.mxu0 0.0
        %1190 = vmatpush1.msra.mxu0 0.0
        %1191 = vmatprep.subr.mxu0 0.0
        %1192 = vmatpush1.msra.mxu0 0.0
        %1193 = vmatprep.subr.mxu0 0.0
        %1194 = vmatpush1.msra.mxu0 0.0
        %1195 = vmatprep.subr.mxu0 0.0
        %1196 = vmatpush1.msra.mxu0 0.0
        %1197 = vmatprep.subr.mxu0 0.0
        %1198 = vmatpush1.msra.mxu0 0.0
        %1199 = vmatprep.subr.mxu0 0.0
        %1200 = vmatpush1.msra.mxu0 0.0
        %1201 = vmatprep.subr.mxu0 0.0
        %1202 = vmatpush1.msra.mxu0 0.0
        %1203 = vmatprep.subr.mxu0 0.0
        %1204 = vmatpush1.msra.mxu0 0.0
        %1205 = vmatprep.subr.mxu0 0.0
        %1206 = vmatpush1.msra.mxu0 0.0
        %1207 = vmatprep.subr.mxu0 0.0
        %1208 = vmatpush1.msra.mxu0 0.0
        %1209 = vmatprep.subr.mxu0 0.0
        %1210 = vmatpush1.msra.mxu0 0.0
        %1211 = vmatprep.subr.mxu0 0.0
        %1212 = vmatpush1.msra.mxu0 %v887
        %1213 = vmatprep.subr.mxu0 0.0
        %1214 = vmatpush1.msra.mxu0 %v882
        %1215 = vmatprep.subr.mxu0 0.0
        %1216 = vmatpush1.msra.mxu0 %v877
        %1217 = vmatprep.subr.mxu0 0.0
        %1218 = vmatpush1.msra.mxu0 %v872
        %1219 = vmatprep.subr.mxu0 0.0
        %1220 = vmatpush2.msra.mxu0 0.0
        %1221 = vmatprep.subr.mxu0 0.0
        %1222 = vmatpush2.msra.mxu0 0.0
        %1223 = vmatprep.subr.mxu0 0.0
        %1224 = vmatpush2.msra.mxu0 0.0
        %1225 = vmatprep.subr.mxu0 0.0
        %1226 = vmatpush2.msra.mxu0 0.0
        %1227 = vmatprep.subr.mxu0 0.0
        %1228 = vmatpush2.msra.mxu0 0.0
        %1229 = vmatprep.subr.mxu0 0.0
        %1230 = vmatpush2.msra.mxu0 0.0
        %1231 = vmatprep.subr.mxu0 0.0
        %1232 = vmatpush2.msra.mxu0 0.0
        %1233 = vmatprep.subr.mxu0 0.0
        %1234 = vmatpush2.msra.mxu0 0.0
        %1235 = vmatprep.subr.mxu0 0.0
        %1236 = vmatpush2.msra.mxu0 0.0
        %1237 = vmatprep.subr.mxu0 0.0
        %1238 = vmatpush2.msra.mxu0 0.0
        %1239 = vmatprep.subr.mxu0 0.0
        %1240 = vmatpush2.msra.mxu0 0.0
        %1241 = vmatprep.subr.mxu0 0.0
        %1242 = vmatpush2.msra.mxu0 0.0
        %1243 = vmatprep.subr.mxu0 0.0
        %1244 = vmatpush2.msra.mxu0 0.0
        %1245 = vmatprep.subr.mxu0 0.0
        %1246 = vmatpush2.msra.mxu0 0.0
        %1247 = vmatprep.subr.mxu0 0.0
        %1248 = vmatpush2.msra.mxu0 0.0
        %1249 = vmatprep.subr.mxu0 0.0
        %1250 = vmatpush2.msra.mxu0 0.0
        %1251 = vmatprep.mubr.f32.mxu0 0.0
        %1252 = vmatmul.mubr.f32.gmra.mxu0 %v1182
        %v1253 = vpop.f32.mrf.mxu0
        %v1254 = vadd.f32 0.0, %v1253
        %v1255 = vpop.f32.mrf.mxu0
        %1256 = vmatprep.mubr.f32.mxu0 0.0
        %1257 = vmatmul.mubr.f32.gmra.mxu0 %v1185
        %v1258 = vpop.f32.mrf.mxu0
        %v1259 = vadd.f32 0.0, %v1258
        %v1260 = vpop.f32.mrf.mxu0
        %1261 = vdwg.mxu0
        %v1263 = vsel %vm297, %v392, 0
        %v1266 = vsel %vm297, %v393, 0
        %1268 = vmatprep.subr.mxu0 0.0
        %1269 = vmatpush1.msra.mxu0 0.0
        %1270 = vmatprep.subr.mxu0 0.0
        %1271 = vmatpush1.msra.mxu0 0.0
        %1272 = vmatprep.subr.mxu0 0.0
        %1273 = vmatpush1.msra.mxu0 0.0
        %1274 = vmatprep.subr.mxu0 0.0
        %1275 = vmatpush1.msra.mxu0 0.0
        %1276 = vmatprep.subr.mxu0 0.0
        %1277 = vmatpush1.msra.mxu0 0.0
        %1278 = vmatprep.subr.mxu0 0.0
        %1279 = vmatpush1.msra.mxu0 0.0
        %1280 = vmatprep.subr.mxu0 0.0
        %1281 = vmatpush1.msra.mxu0 0.0
        %1282 = vmatprep.subr.mxu0 0.0
        %1283 = vmatpush1.msra.mxu0 0.0
        %1284 = vmatprep.subr.mxu0 0.0
        %1285 = vmatpush1.msra.mxu0 0.0
        %1286 = vmatprep.subr.mxu0 0.0
        %1287 = vmatpush1.msra.mxu0 0.0
        %1288 = vmatprep.subr.mxu0 0.0
        %1289 = vmatpush1.msra.mxu0 0.0
        %1290 = vmatprep.subr.mxu0 0.0
        %1291 = vmatpush1.msra.mxu0 0.0
        %1292 = vmatprep.subr.mxu0 0.0
        %1293 = vmatpush1.msra.mxu0 %v1016
        %1294 = vmatprep.subr.mxu0 0.0
        %1295 = vmatpush1.msra.mxu0 %v1011
        %1296 = vmatprep.subr.mxu0 0.0
        %1297 = vmatpush1.msra.mxu0 %v1006
        %1298 = vmatprep.subr.mxu0 0.0
        %1299 = vmatpush1.msra.mxu0 %v1001
        %1300 = vmatprep.subr.mxu0 0.0
        %1301 = vmatpush2.msra.mxu0 0.0
        %1302 = vmatprep.subr.mxu0 0.0
        %1303 = vmatpush2.msra.mxu0 0.0
        %1304 = vmatprep.subr.mxu0 0.0
        %1305 = vmatpush2.msra.mxu0 0.0
        %1306 = vmatprep.subr.mxu0 0.0
        %1307 = vmatpush2.msra.mxu0 0.0
        %1308 = vmatprep.subr.mxu0 0.0
        %1309 = vmatpush2.msra.mxu0 0.0
        %1310 = vmatprep.subr.mxu0 0.0
        %1311 = vmatpush2.msra.mxu0 0.0
        %1312 = vmatprep.subr.mxu0 0.0
        %1313 = vmatpush2.msra.mxu0 0.0
        %1314 = vmatprep.subr.mxu0 0.0
        %1315 = vmatpush2.msra.mxu0 0.0
        %1316 = vmatprep.subr.mxu0 0.0
        %1317 = vmatpush2.msra.mxu0 0.0
        %1318 = vmatprep.subr.mxu0 0.0
        %1319 = vmatpush2.msra.mxu0 0.0
        %1320 = vmatprep.subr.mxu0 0.0
        %1321 = vmatpush2.msra.mxu0 0.0
        %1322 = vmatprep.subr.mxu0 0.0
        %1323 = vmatpush2.msra.mxu0 0.0
        %1324 = vmatprep.subr.mxu0 0.0
        %1325 = vmatpush2.msra.mxu0 0.0
        %1326 = vmatprep.subr.mxu0 0.0
        %1327 = vmatpush2.msra.mxu0 0.0
        %1328 = vmatprep.subr.mxu0 0.0
        %1329 = vmatpush2.msra.mxu0 0.0
        %1330 = vmatprep.subr.mxu0 0.0
        %1331 = vmatpush2.msra.mxu0 0.0
        %1332 = vmatprep.mubr.f32.mxu0 0.0
        %1333 = vmatmul.mubr.f32.gmra.mxu0 %v1263
        %v1334 = vpop.f32.mrf.mxu0
        %v1335 = vadd.f32 0.0, %v1334
        %v1336 = vpop.f32.mrf.mxu0
        %1337 = vmatprep.mubr.f32.mxu0 0.0
        %1338 = vmatmul.mubr.f32.gmra.mxu0 %v1266
        %v1339 = vpop.f32.mrf.mxu0
        %v1340 = vadd.f32 0.0, %v1339
        %v1341 = vpop.f32.mrf.mxu0
        %1342 = vdwg.mxu0
        %1343 = vst.msk [vmem:[%s268] sm:$0xff] %vm297, %v1092
        %1344 = vst.msk [vmem:[%s268 + $0x8] sm:$0xff] %vm297, %v1097
        %1345 = vst.msk [vmem:[%s268 + $0x10] sm:$0xff] %vm297, %v1173
        %1346 = vst.msk [vmem:[%s268 + $0x18] sm:$0xff] %vm297, %v1178
        %1347 = vst.msk [vmem:[%s268 + $0x20] sm:$0xff] %vm297, %v1254
        %1348 = vst.msk [vmem:[%s268 + $0x28] sm:$0xff] %vm297, %v1259
        %1349 = vst.msk [vmem:[%s268 + $0x30] sm:$0xff] %vm297, %v1335
        %1350 = vst.msk [vmem:[%s268 + $0x38] sm:$0xff] %vm297, %v1340
        %s1351 = sand.u32 %s109, 1
        %s1352 = scalar_lea.sflag [#allocation4], %s1351
        %s1353 = sand.u32 %s109, 1
        %s1354 = smul.addr %s1353, 64
        %s1355 = scalar_lea.vmem [#allocation8], %s1354
        // Predicated region
        $region45: #{tpu_custom_call.1} parent=31 // pred_check
          %p1356 = pneg %p119
        $region46: #{tpu_custom_call.1} parent=31 // pred_check_branch
          %1358 = sbr.rel (%p1356) target = $region48
        $region47: #{tpu_custom_call.1} parent=31 // pred_region
          %s1359 = smul.u32 4, %s23
          %s1361 = ssub.s32 1024, 1024
          %1362 = vsyncadd %s1352, %s1361
          %s1363 = smul.addr %s1359, 2
          %s1364 = smul.addr %s1363, 128
          %s1365 = scalar_lea.hbm %s3, %s1364
          %s1366 = sshll.u32 %s1355, 4
          %s1367 = int_to_ptr.vmem [resolvable:$true] %s1366
          %1372 = dma.vmem_to_hbm [thread:$0]  %s1367, 1024, %s1365, %s1352, 128, 128, 8
        $region48: #{tpu_custom_call.1} parent=31 // pred_fallthru
          _
      $region32: #{tpu_custom_call.1} parent=5 // pred_fallthru
        _
      %p1373 = scmp.le.s32.totalorder 2, %s18
      // Predicated region
      $region49: #{tpu_custom_call.1} parent=5 // pred_check
        %p1374 = pneg %p1373
      $region50: #{tpu_custom_call.1} parent=5 // pred_check_branch
        %1376 = sbr.rel (%p1374) target = $region52
      $region51: #{tpu_custom_call.1} parent=5 // pred_region
        %s1377 = ssub.s32 %s18, 2
        // Predicated region
        $region53: #{tpu_custom_call.1} parent=51 // pred_check
          %p1378 = pneg %p125
        $region54: #{tpu_custom_call.1} parent=51 // pred_check_branch
          %1380 = sbr.rel (%p1378) target = $region56
        $region55: #{tpu_custom_call.1} parent=51 // pred_region
          %s1381 = sand.u32 %s110, 1
          %s1382 = scalar_lea.sflag [#allocation4], %s1381
          %s1383 = sand.u32 %s110, 1
          %s1384 = smul.addr %s1383, 64
          %s1385 = scalar_lea.vmem [#allocation8], %s1384
          %1386 = dma.done %s1382, 1024
        $region56: #{tpu_custom_call.1} parent=51 // pred_fallthru
          _
      $region52: #{tpu_custom_call.1} parent=5 // pred_fallthru
        _
    $region6: #{tpu_custom_call.1} parent=1 // loop_footer
      %s22 = sadd.s32 1, %s18
    $region7: #{tpu_custom_call.1} parent=1 // loop_footer_branch
      %17 = sbr.rel target = $region3
    $region8: #{tpu_custom_call.1} parent=1 // loop_exit
      _
    %1387 = vsyncpa [#allocation3], 1
    %s1388 = scalar_lea.sflag [#allocation3], 1
    %1389 = vsyncpa %s1388, 1
    %1390 = vsyncpa [#allocation6], 1
    %s1391 = scalar_lea.sflag [#allocation6], 1
    %1392 = vsyncpa %s1391, 1
    %1393 = vsyncpa [#allocation4], 1
    %s1394 = scalar_lea.sflag [#allocation4], 1
    %1395 = vsyncpa %s1394, 1

</llo_original>
